<compile_context>
chip_gen: v5e
topology: v5e:2x2
jax: 0.10.0
libtpu: 0.0.40
codegen_flags: <defaults>
</compile_context>

<pallas_src>
import functools

import jax
import jax.numpy as jnp
from jax.experimental import pallas as pl
from jax.experimental.pallas import tpu as pltpu


# ----------------------------------------------------------------------------
# Fused kernel: for each filter size k
#     conv_k[b, t, f] = sum_{j,e} x[b, t+j, e] * w_k[j*E + e, f]
#     pooled_k[b, f]  = max_t conv_k[b, t, f]
#   feature[b, :] = relu( concat_k(pooled_k)[b, :] + conv_bias[:] )
#   logits        = feature @ out_w + out_b
# (bias/ReLU after the max is equivalent to PyTorch's
#  max_t(relu(conv + bias)) because bias is constant over t and ReLU is
#  monotonic.)
# ----------------------------------------------------------------------------
def _tc_fused_kernel(filter_sizes, compute_dtype, *refs):
    n = len(filter_sizes)
    x_ref = refs[0]                  # (TB, L, E)
    w_refs = refs[1:1 + n]           # each (k*E, F)
    b_ref = refs[1 + n]              # (1, n*F)
    ow_ref = refs[2 + n]             # (n*F, C)
    ob_ref = refs[3 + n]             # (1, C)
    logits_ref = refs[4 + n]         # out: (TB, C)
    feat_ref = refs[5 + n]           # out: (TB, n*F)

    TB, L, E = x_ref.shape
    x = x_ref[...].astype(compute_dtype)

    pooled = []
    for i, k in enumerate(filter_sizes):
        Lout = L - k + 1
        # im2col window: (TB, Lout, k*E) built from k static shifted slices;
        # one MXU matmul with a deep (k*E) contraction instead of k shallow ones.
        x_win = jnp.concatenate([x[:, j:j + Lout, :] for j in range(k)],
                                axis=-1)
        acc = jax.lax.dot_general(
            x_win, w_refs[i][...].astype(compute_dtype),
            dimension_numbers=(((2,), (0,)), ((), ())),
            preferred_element_type=jnp.float32)          # (TB, Lout, F) f32
        pooled.append(jnp.max(acc, axis=1))              # AdaptiveMaxPool1d(1)

    pooled = jnp.concatenate(pooled, axis=-1)            # (TB, n*F)
    # NOTE: n*F = 96 here; padding to a lane-dense 128 would help at scale,
    # negligible at these shapes so the exact (B, n*F) feature is stored.
    feat = jnp.maximum(pooled + b_ref[...], 0.0)         # bias + ReLU (post-max)
    feat_ref[...] = feat

    logits_ref[...] = (
        jnp.dot(feat.astype(compute_dtype), ow_ref[...].astype(compute_dtype),
                preferred_element_type=jnp.float32)
        + ob_ref[...])


def _pick_batch_tile(B, L, E, nF, C, budget_bytes=8 << 20):
    """Batch tile so 2x-double-buffered per-step VMEM stays within budget."""
    per_row = 4 * (L * E + nF + C)                 # f32 bytes per batch row
    tb = max(1, budget_bytes // (2 * per_row))
    if tb >= B:
        return B
    return max(8, (tb // 8) * 8)                   # keep (8,128) rules for 2D outs


def tc_base_forward(params, features, filter_sizes,
                    compute_dtype=jnp.float32):
    """Matches TC_base.forward: returns (logits, feature).

    features: (B, L, in_features) f32.
    compute_dtype: set jnp.bfloat16 on v6e/v7x for 2x MXU rate (f32 epilogue).
    """
    x = features.astype(jnp.float32)
    B, L, E = x.shape
    filter_sizes = tuple(filter_sizes)
    assert L >= max(filter_sizes), "sequence shorter than largest filter"

    n = len(filter_sizes)
    nF = params["out_w"].shape[0]
    F = nF // n
    C = params["out_w"].shape[1]

    TB = _pick_batch_tile(B, L, E, nF, C)
    grid = (pl.cdiv(B, TB),)

    in_specs = [pl.BlockSpec((TB, L, E), lambda i: (i, 0, 0))]
    for k in filter_sizes:
        in_specs.append(pl.BlockSpec((k * E, F), lambda i: (0, 0)))
    in_specs += [
        pl.BlockSpec((1, nF), lambda i: (0, 0)),
        pl.BlockSpec((nF, C), lambda i: (0, 0)),
        pl.BlockSpec((1, C), lambda i: (0, 0)),
    ]
    out_specs = (
        pl.BlockSpec((TB, C), lambda i: (i, 0)),
        pl.BlockSpec((TB, nF), lambda i: (i, 0)),
    )
    out_shape = (
        jax.ShapeDtypeStruct((B, C), jnp.float32),
        jax.ShapeDtypeStruct((B, nF), jnp.float32),
    )

    kernel = functools.partial(_tc_fused_kernel, filter_sizes, compute_dtype)
    logits, feature = pl.pallas_call(
        kernel,
        grid=grid,
        in_specs=in_specs,
        out_specs=out_specs,
        out_shape=out_shape,
        compiler_params=pltpu.CompilerParams(
            dimension_semantics=("parallel",)),   # shards batch across TCs (v7x)
    )(x, *[params["conv_w"][k] for k in filter_sizes],
      params["conv_b_all"], params["out_w"], params["out_b"])

    # nn.Dropout in eval mode is identity.
    # TODO(synk): training-mode dropout (random mask) not implemented.
    return logits, feature


# ----------------------------------------------------------------------------
# Parameter setup (PyTorch-compatible layouts, pre-reshaped for the kernel)
# ----------------------------------------------------------------------------
def init_params(key, in_features, filter_num, filter_sizes, class_num):
    keys = jax.random.split(key, 2 * len(filter_sizes) + 2)
    it = iter(keys)
    E, F = in_features, filter_num
    conv_w = {}
    conv_b = []
    for k in filter_sizes:
        # PyTorch Conv1d weight is (F, E, k); store as (k*E, F):
        #   row j*E + e  <->  w_pt[f, e, j], pairing with x[:, t+j, e].
        w_pt = jax.random.normal(next(it), (F, E, k), jnp.float32) * 0.05
        conv_w[k] = jnp.transpose(w_pt, (2, 1, 0)).reshape(k * E, F)
        conv_b.append(jax.random.normal(next(it), (F,), jnp.float32) * 0.05)
    D = F * len(filter_sizes)
    # PyTorch Linear weight is (C, D); store transposed (D, C).
    out_w_pt = jax.random.normal(next(it), (class_num, D), jnp.float32) * 0.05
    out_b = jax.random.normal(next(it), (class_num,), jnp.float32) * 0.05
    return {
        "conv_w": conv_w,
        "conv_b_all": jnp.concatenate(conv_b).reshape(1, D),
        "out_w": out_w_pt.T,
        "out_b": out_b.reshape(1, class_num),
    }


# ----------------------------------------------------------------------------
# Pure-JAX reference (original op order: conv -> +bias -> ReLU -> max)
# ----------------------------------------------------------------------------
def _reference_forward(params, features, filter_sizes):
    x = features.astype(jnp.float32)
    B, L, E = x.shape
    n = len(filter_sizes)
    nF = params["out_w"].shape[0]
    F = nF // n
    feats = []
    for idx, k in enumerate(filter_sizes):
        Lout = L - k + 1
        x_win = jnp.stack([x[:, j:j + Lout, :] for j in range(k)], axis=2)
        x_win = x_win.reshape(B, Lout, k * E)
        conv = jnp.einsum("btd,df->btf", x_win, params["conv_w"][k])
        bias = params["conv_b_all"][0, idx * F:(idx + 1) * F]
        feats.append(jnp.max(jax.nn.relu(conv + bias), axis=1))
    feat = jnp.concatenate(feats, axis=1)
    logits = feat @ params["out_w"] + params["out_b"]
    return logits, feat


if __name__ == "__main__":
    # Small, deterministic shapes consistent with the module.
    IN_FEATURES = 32          # in_features (channels after the permute)
    FILTER_NUM = 32
    FILTER_SIZES = (3, 4, 5)
    CLASS_NUM = 2
    B, L = 2, 16

    root = jax.random.PRNGKey(0)
    k_params, k_feat = jax.random.split(root)
    params = init_params(k_params, IN_FEATURES, FILTER_NUM, FILTER_SIZES,
                         CLASS_NUM)
    features = jax.random.normal(k_feat, (B, L, IN_FEATURES), jnp.float32)

    logits, feature = tc_base_forward(params, features, FILTER_SIZES)
    jax.block_until_ready((logits, feature))

    assert logits.shape == (B, CLASS_NUM), logits.shape
    assert feature.shape == (B, FILTER_NUM * len(FILTER_SIZES)), feature.shape

    ref_logits, ref_feature = _reference_forward(params, features,
                                                 FILTER_SIZES)
    assert jnp.allclose(feature, ref_feature, rtol=1e-2, atol=1e-2)
    assert jnp.allclose(logits, ref_logits, rtol=1e-2, atol=1e-2)

    print("KERNEL_OK")
</pallas_src>

<mosaic_0001>
module attributes {stable_mosaic.version = 11 : i64} {
  func.func @_tc_fused_kernel(%arg0: i32, %arg1: memref<2x16x32xf32, #tpu.memory_space<vmem>>, %arg2: memref<96x32xf32, #tpu.memory_space<vmem>>, %arg3: memref<128x32xf32, #tpu.memory_space<vmem>>, %arg4: memref<160x32xf32, #tpu.memory_space<vmem>>, %arg5: memref<1x96xf32, #tpu.memory_space<vmem>>, %arg6: memref<96x2xf32, #tpu.memory_space<vmem>>, %arg7: memref<1x2xf32, #tpu.memory_space<vmem>>, %arg8: memref<2x2xf32, #tpu.memory_space<vmem>>, %arg9: memref<2x96xf32, #tpu.memory_space<vmem>>) attributes {dimension_semantics = [#tpu.dimension_semantics<parallel>], iteration_bounds = array<i64: 1>, scalar_prefetch = 0 : i64, scratch_operands = 0 : i64, tpu.core_type = #tpu.core_type<tc>, window_params = [{transform_indices = @transform_0, window_bounds = array<i64: 2, 16, 32>}, {pipeline_mode = #tpu.pipeline_mode<synchronous>, transform_indices = @transform_1, window_bounds = array<i64: 96, 32>}, {pipeline_mode = #tpu.pipeline_mode<synchronous>, transform_indices = @transform_2, window_bounds = array<i64: 128, 32>}, {pipeline_mode = #tpu.pipeline_mode<synchronous>, transform_indices = @transform_3, window_bounds = array<i64: 160, 32>}, {pipeline_mode = #tpu.pipeline_mode<synchronous>, transform_indices = @transform_4, window_bounds = array<i64: 1, 96>}, {pipeline_mode = #tpu.pipeline_mode<synchronous>, transform_indices = @transform_5, window_bounds = array<i64: 96, 2>}, {pipeline_mode = #tpu.pipeline_mode<synchronous>, transform_indices = @transform_6, window_bounds = array<i64: 1, 2>}, {transform_indices = @transform_7, window_bounds = array<i64: 2, 2>}, {transform_indices = @transform_8, window_bounds = array<i64: 2, 96>}]} {
    %c0 = arith.constant 0 : index
    %c0_0 = arith.constant 0 : index
    %c0_1 = arith.constant 0 : index
    %0 = vector.load %arg1[%c0, %c0_0, %c0_1] : memref<2x16x32xf32, #tpu.memory_space<vmem>>, vector<2x16x32xf32>
    %1 = vector.extract_strided_slice %0 {offsets = [0, 0, 0], sizes = [2, 14, 32], strides = [1, 1, 1]} : vector<2x16x32xf32> to vector<2x14x32xf32>
    %2 = vector.extract_strided_slice %0 {offsets = [0, 1, 0], sizes = [2, 14, 32], strides = [1, 1, 1]} : vector<2x16x32xf32> to vector<2x14x32xf32>
    %3 = vector.extract_strided_slice %0 {offsets = [0, 2, 0], sizes = [2, 14, 32], strides = [1, 1, 1]} : vector<2x16x32xf32> to vector<2x14x32xf32>
    %4 = tpu.concatenate %1, %2, %3 in 2 : vector<2x14x32xf32>, vector<2x14x32xf32>, vector<2x14x32xf32> -> vector<2x14x96xf32>
    %c0_2 = arith.constant 0 : index
    %c0_3 = arith.constant 0 : index
    %5 = vector.load %arg2[%c0_2, %c0_3] : memref<96x32xf32, #tpu.memory_space<vmem>>, vector<96x32xf32>
    %cst = arith.constant dense<0.000000e+00> : vector<2x14x32xf32>
    %6 = tpu.matmul %4, %5, %cst {dimension_numbers = #tpu.dot_dimension_numbers<[2], [0], [0, 1], [1], [0, 0, 0, 1, 1, 1], [], []>} : vector<2x14x96xf32>, vector<96x32xf32>, vector<2x14x32xf32> -> vector<2x14x32xf32>
    %cst_4 = arith.constant dense<0xFF800000> : vector<2x32xf32>
    %7 = vector.multi_reduction <maximumf>, %6, %cst_4 [1] : vector<2x14x32xf32> to vector<2x32xf32>
    %8 = vector.extract_strided_slice %0 {offsets = [0, 0, 0], sizes = [2, 13, 32], strides = [1, 1, 1]} : vector<2x16x32xf32> to vector<2x13x32xf32>
    %9 = vector.extract_strided_slice %0 {offsets = [0, 1, 0], sizes = [2, 13, 32], strides = [1, 1, 1]} : vector<2x16x32xf32> to vector<2x13x32xf32>
    %10 = vector.extract_strided_slice %0 {offsets = [0, 2, 0], sizes = [2, 13, 32], strides = [1, 1, 1]} : vector<2x16x32xf32> to vector<2x13x32xf32>
    %11 = vector.extract_strided_slice %0 {offsets = [0, 3, 0], sizes = [2, 13, 32], strides = [1, 1, 1]} : vector<2x16x32xf32> to vector<2x13x32xf32>
    %12 = tpu.concatenate %8, %9, %10, %11 in 2 : vector<2x13x32xf32>, vector<2x13x32xf32>, vector<2x13x32xf32>, vector<2x13x32xf32> -> vector<2x13x128xf32>
    %c0_5 = arith.constant 0 : index
    %c0_6 = arith.constant 0 : index
    %13 = vector.load %arg3[%c0_5, %c0_6] : memref<128x32xf32, #tpu.memory_space<vmem>>, vector<128x32xf32>
    %cst_7 = arith.constant dense<0.000000e+00> : vector<2x13x32xf32>
    %14 = tpu.matmul %12, %13, %cst_7 {dimension_numbers = #tpu.dot_dimension_numbers<[2], [0], [0, 1], [1], [0, 0, 0, 1, 1, 1], [], []>} : vector<2x13x128xf32>, vector<128x32xf32>, vector<2x13x32xf32> -> vector<2x13x32xf32>
    %cst_8 = arith.constant dense<0xFF800000> : vector<2x32xf32>
    %15 = vector.multi_reduction <maximumf>, %14, %cst_8 [1] : vector<2x13x32xf32> to vector<2x32xf32>
    %16 = vector.extract_strided_slice %0 {offsets = [0, 0, 0], sizes = [2, 12, 32], strides = [1, 1, 1]} : vector<2x16x32xf32> to vector<2x12x32xf32>
    %17 = vector.extract_strided_slice %0 {offsets = [0, 1, 0], sizes = [2, 12, 32], strides = [1, 1, 1]} : vector<2x16x32xf32> to vector<2x12x32xf32>
    %18 = vector.extract_strided_slice %0 {offsets = [0, 2, 0], sizes = [2, 12, 32], strides = [1, 1, 1]} : vector<2x16x32xf32> to vector<2x12x32xf32>
    %19 = vector.extract_strided_slice %0 {offsets = [0, 3, 0], sizes = [2, 12, 32], strides = [1, 1, 1]} : vector<2x16x32xf32> to vector<2x12x32xf32>
    %20 = vector.extract_strided_slice %0 {offsets = [0, 4, 0], sizes = [2, 12, 32], strides = [1, 1, 1]} : vector<2x16x32xf32> to vector<2x12x32xf32>
    %21 = tpu.concatenate %16, %17, %18, %19, %20 in 2 : vector<2x12x32xf32>, vector<2x12x32xf32>, vector<2x12x32xf32>, vector<2x12x32xf32>, vector<2x12x32xf32> -> vector<2x12x160xf32>
    %c0_9 = arith.constant 0 : index
    %c0_10 = arith.constant 0 : index
    %22 = vector.load %arg4[%c0_9, %c0_10] : memref<160x32xf32, #tpu.memory_space<vmem>>, vector<160x32xf32>
    %cst_11 = arith.constant dense<0.000000e+00> : vector<2x12x32xf32>
    %23 = tpu.matmul %21, %22, %cst_11 {dimension_numbers = #tpu.dot_dimension_numbers<[2], [0], [0, 1], [1], [0, 0, 0, 1, 1, 1], [], []>} : vector<2x12x160xf32>, vector<160x32xf32>, vector<2x12x32xf32> -> vector<2x12x32xf32>
    %cst_12 = arith.constant dense<0xFF800000> : vector<2x32xf32>
    %24 = vector.multi_reduction <maximumf>, %23, %cst_12 [1] : vector<2x12x32xf32> to vector<2x32xf32>
    %25 = tpu.concatenate %7, %15, %24 in 1 : vector<2x32xf32>, vector<2x32xf32>, vector<2x32xf32> -> vector<2x96xf32>
    %c0_13 = arith.constant 0 : index
    %c0_14 = arith.constant 0 : index
    %26 = vector.load %arg5[%c0_13, %c0_14] : memref<1x96xf32, #tpu.memory_space<vmem>>, vector<1x96xf32>
    %27 = vector.broadcast %26 : vector<1x96xf32> to vector<2x96xf32>
    %28 = arith.addf %25, %27 : vector<2x96xf32>
    %cst_15 = arith.constant 0.000000e+00 : f32
    %29 = vector.broadcast %cst_15 : f32 to vector<2x96xf32>
    %30 = arith.maximumf %28, %29 : vector<2x96xf32>
    %c0_16 = arith.constant 0 : index
    %c0_17 = arith.constant 0 : index
    %31 = vector.load %arg9[%c0_16, %c0_17] : memref<2x96xf32, #tpu.memory_space<vmem>>, vector<2x96xf32>
    tpu.vector_store %arg9[%c0_16, %c0_17], %30 {strides = array<i32>} : memref<2x96xf32, #tpu.memory_space<vmem>>, vector<2x96xf32>,
    %c0_18 = arith.constant 0 : index
    %c0_19 = arith.constant 0 : index
    %32 = vector.load %arg6[%c0_18, %c0_19] : memref<96x2xf32, #tpu.memory_space<vmem>>, vector<96x2xf32>
    %cst_20 = arith.constant dense<0.000000e+00> : vector<2x2xf32>
    %33 = tpu.matmul %30, %32, %cst_20 {dimension_numbers = #tpu.dot_dimension_numbers<[1], [0], [0], [1], [0, 0, 1, 1], [], []>} : vector<2x96xf32>, vector<96x2xf32>, vector<2x2xf32> -> vector<2x2xf32>
    %c0_21 = arith.constant 0 : index
    %c0_22 = arith.constant 0 : index
    %34 = vector.load %arg7[%c0_21, %c0_22] : memref<1x2xf32, #tpu.memory_space<vmem>>, vector<1x2xf32>
    %35 = vector.broadcast %34 : vector<1x2xf32> to vector<2x2xf32>
    %36 = arith.addf %33, %35 : vector<2x2xf32>
    %c0_23 = arith.constant 0 : index
    %c0_24 = arith.constant 0 : index
    %37 = vector.load %arg8[%c0_23, %c0_24] : memref<2x2xf32, #tpu.memory_space<vmem>>, vector<2x2xf32>
    tpu.vector_store %arg8[%c0_23, %c0_24], %36 {strides = array<i32>} : memref<2x2xf32, #tpu.memory_space<vmem>>, vector<2x2xf32>,
    return
  }
  func.func @transform_0(%arg0: i32) -> (i32, i32, i32) {
    %c0_i32 = arith.constant 0 : i32
    %c0_i32_0 = arith.constant 0 : i32
    %c0_i32_1 = arith.constant 0 : i32
    return %arg0, %c0_i32, %c0_i32_0 : i32, i32, i32
  }
  func.func @transform_1(%arg0: i32) -> (i32, i32) {
    %c0_i32 = arith.constant 0 : i32
    %c0_i32_0 = arith.constant 0 : i32
    %c0_i32_1 = arith.constant 0 : i32
    return %c0_i32, %c0_i32_0 : i32, i32
  }
  func.func @transform_2(%arg0: i32) -> (i32, i32) {
    %c0_i32 = arith.constant 0 : i32
    %c0_i32_0 = arith.constant 0 : i32
    %c0_i32_1 = arith.constant 0 : i32
    return %c0_i32, %c0_i32_0 : i32, i32
  }
  func.func @transform_3(%arg0: i32) -> (i32, i32) {
    %c0_i32 = arith.constant 0 : i32
    %c0_i32_0 = arith.constant 0 : i32
    %c0_i32_1 = arith.constant 0 : i32
    return %c0_i32, %c0_i32_0 : i32, i32
  }
  func.func @transform_4(%arg0: i32) -> (i32, i32) {
    %c0_i32 = arith.constant 0 : i32
    %c0_i32_0 = arith.constant 0 : i32
    %c0_i32_1 = arith.constant 0 : i32
    return %c0_i32, %c0_i32_0 : i32, i32
  }
  func.func @transform_5(%arg0: i32) -> (i32, i32) {
    %c0_i32 = arith.constant 0 : i32
    %c0_i32_0 = arith.constant 0 : i32
    %c0_i32_1 = arith.constant 0 : i32
    return %c0_i32, %c0_i32_0 : i32, i32
  }
  func.func @transform_6(%arg0: i32) -> (i32, i32) {
    %c0_i32 = arith.constant 0 : i32
    %c0_i32_0 = arith.constant 0 : i32
    %c0_i32_1 = arith.constant 0 : i32
    return %c0_i32, %c0_i32_0 : i32, i32
  }
  func.func @transform_7(%arg0: i32) -> (i32, i32) {
    %c0_i32 = arith.constant 0 : i32
    %c0_i32_0 = arith.constant 0 : i32
    return %arg0, %c0_i32 : i32, i32
  }
  func.func @transform_8(%arg0: i32) -> (i32, i32) {
    %c0_i32 = arith.constant 0 : i32
    %c0_i32_0 = arith.constant 0 : i32
    return %arg0, %c0_i32 : i32, i32
  }
}

</mosaic_0001>

<llo_original>
// kernel: tpu_custom_call.1
$region0: #{tpu_custom_call.1}
  #allocation0 [shape = 'u32[]', space=smem, size = 0x4, offset = 0x4, fixed_abs, tag = 'smem constant byte address 0x4 - core index']
  #allocation1 [shape = 'u32[72,128]{1,0:T(1,128)}', space=vmem, size = 0x9000, scoped, tag = 'internal scratch']
  %s0 = inlined_call_operand.vmem [shape: f32[2,16,32], index: 0, kind: input, shape index: {}]
  %s1 = inlined_call_operand.vmem [shape: f32[96,32], index: 1, kind: input, shape index: {}]
  %s2 = inlined_call_operand.vmem [shape: f32[128,32], index: 2, kind: input, shape index: {}]
  %s3 = inlined_call_operand.vmem [shape: f32[160,32], index: 3, kind: input, shape index: {}]
  %s4 = inlined_call_operand.vmem [shape: f32[1,96], index: 4, kind: input, shape index: {}]
  %s5 = inlined_call_operand.vmem [shape: f32[96,2], index: 5, kind: input, shape index: {}]
  %s6 = inlined_call_operand.vmem [shape: f32[1,2], index: 6, kind: input, shape index: {}]
  %s7 = inlined_call_operand.hbm [shape: f32[2,2], index: 7, kind: output, shape index: {0}]
  %s8 = inlined_call_operand.hbm [shape: f32[2,96], index: 8, kind: output, shape index: {1}]
  %9 = xla_tuple %s7, %s8
  %s10 = sld [smem:[#allocation0]]
  $region46: #{tpu_custom_call.1} parent=0
    _
  %s12 = ssub.s32 1, %s10
  %s13 = scalar_select 0, %s12, %s10
  $region1: #{tpu_custom_call.1} parent=0
    #allocation2 [shape = 'u8[1024]{0}', space=vmem, size = 0x400, scoped, tag = 'output window, operand 0, single buffered']
    #allocation3 [shape = 's32[1]{0}', space=sflag, size = 0x4, scoped, tag = 'scoped memory for tpu_custom_call.1']
    #allocation4 [shape = 'u8[1024]{0}', space=vmem, size = 0x400, scoped, tag = 'output window, operand 1, single buffered']
    #allocation5 [shape = 's32[1]{0}', space=sflag, size = 0x4, scoped, tag = 'scoped memory for tpu_custom_call.1']
    %14 = vsyncpa [#allocation3], 0
    %15 = vsyncpa [#allocation5], 0
    // Predicated region
    $region2: #{tpu_custom_call.1} parent=1 // pred_check
      _
    $region3: #{tpu_custom_call.1} parent=1 // pred_check_branch
      %17 = sbr.rel (0) target = $region5
    $region4: #{tpu_custom_call.1} parent=1 // pred_region
      _
    $region5: #{tpu_custom_call.1} parent=1 // pred_fallthru
      _
    // Predicated region
    $region6: #{tpu_custom_call.1} parent=1 // pred_check
      _
    $region7: #{tpu_custom_call.1} parent=1 // pred_check_branch
      %19 = sbr.rel (0) target = $region9
    $region8: #{tpu_custom_call.1} parent=1 // pred_region
      _
    $region9: #{tpu_custom_call.1} parent=1 // pred_fallthru
      _
    // Predicated region
    $region10: #{tpu_custom_call.1} parent=1 // pred_check
      _
    $region11: #{tpu_custom_call.1} parent=1 // pred_check_branch
      %21 = sbr.rel (0) target = $region13
    $region12: #{tpu_custom_call.1} parent=1 // pred_region
      _
    $region13: #{tpu_custom_call.1} parent=1 // pred_fallthru
      _
    // Predicated region
    $region14: #{tpu_custom_call.1} parent=1 // pred_check
      _
    $region15: #{tpu_custom_call.1} parent=1 // pred_check_branch
      %23 = sbr.rel (0) target = $region17
    $region16: #{tpu_custom_call.1} parent=1 // pred_region
      _
    $region17: #{tpu_custom_call.1} parent=1 // pred_fallthru
      _
    // Predicated region
    $region18: #{tpu_custom_call.1} parent=1 // pred_check
      _
    $region19: #{tpu_custom_call.1} parent=1 // pred_check_branch
      %25 = sbr.rel (0) target = $region21
    $region20: #{tpu_custom_call.1} parent=1 // pred_region
      _
    $region21: #{tpu_custom_call.1} parent=1 // pred_fallthru
      _
    // Predicated region
    $region22: #{tpu_custom_call.1} parent=1 // pred_check
      _
    $region23: #{tpu_custom_call.1} parent=1 // pred_check_branch
      %27 = sbr.rel (0) target = $region25
    $region24: #{tpu_custom_call.1} parent=1 // pred_region
      _
    $region25: #{tpu_custom_call.1} parent=1 // pred_fallthru
      _
    // Predicated region
    $region26: #{tpu_custom_call.1} parent=1 // pred_check
      _
    $region27: #{tpu_custom_call.1} parent=1 // pred_check_branch
      %29 = sbr.rel (0) target = $region29
    $region28: #{tpu_custom_call.1} parent=1 // pred_region
      _
    $region29: #{tpu_custom_call.1} parent=1 // pred_fallthru
      _
    %v30 = vld [vmem:[%s0] sm:$0xff]
    %v31 = vld [vmem:[%s0 + $0x8] sm:$0xff]
    %v32 = vld [vmem:[%s0 + $0x10] sm:$0xff]
    %v33 = vld [vmem:[%s0 + $0x18] sm:$0xff]
    %vm38 = vcmask 1046528
    %v39 = vrot.slane %v30, 1
    %v40 = vrot.slane %v31, 1
    %v41 = vsel %vm38, %v39, %v40
    %v42 = vrot.slane %v32, 1
    %v43 = vrot.slane %v33, 1
    %v44 = vsel %vm38, %v42, %v43
    %45 = vrot.lane.b32.xlu0 %v41, 32
    %v46 = vpop.permute.xlu0 %45
    %47 = vrot.lane.b32.xlu0 %v40, 32
    %v48 = vpop.permute.xlu0 %47
    %49 = vrot.lane.b32.xlu0 %v44, 32
    %v50 = vpop.permute.xlu0 %49
    %51 = vrot.lane.b32.xlu0 %v43, 32
    %v52 = vpop.permute.xlu0 %51
    %vm57 = vcmask 1045504
    %v58 = vrot.slane %v30, 2
    %v59 = vrot.slane %v31, 2
    %v60 = vsel %vm57, %v58, %v59
    %v61 = vrot.slane %v32, 2
    %v62 = vrot.slane %v33, 2
    %v63 = vsel %vm57, %v61, %v62
    %64 = vrot.lane.b32.xlu0 %v60, 64
    %v65 = vpop.permute.xlu0 %64
    %66 = vrot.lane.b32.xlu0 %v59, 64
    %v67 = vpop.permute.xlu0 %66
    %68 = vrot.lane.b32.xlu0 %v63, 64
    %v69 = vpop.permute.xlu0 %68
    %70 = vrot.lane.b32.xlu0 %v62, 64
    %v71 = vpop.permute.xlu0 %70
    %vm76 = vcmask 261120
    %v77 = vsel %vm76, %v30, %v46
    %v78 = vsel %vm76, %v31, %v48
    %v79 = vsel %vm76, %v32, %v50
    %v80 = vsel %vm76, %v33, %v52
    %vm81 = vcmask 523264
    %v82 = vsel %vm81, %v77, %v65
    %v83 = vsel %vm81, %v78, %v67
    %v84 = vsel %vm81, %v79, %v69
    %v85 = vsel %vm81, %v80, %v71
    %v86 = vld [vmem:[%s1] sm:$0xff]
    %v87 = vld [vmem:[%s1 + $0x8] sm:$0xff]
    %v88 = vld [vmem:[%s1 + $0x10] sm:$0xff]
    %v89 = vld [vmem:[%s1 + $0x18] sm:$0xff]
    %v90 = vld [vmem:[%s1 + $0x20] sm:$0xff]
    %v91 = vld [vmem:[%s1 + $0x28] sm:$0xff]
    %v92 = vld [vmem:[%s1 + $0x30] sm:$0xff]
    %v93 = vld [vmem:[%s1 + $0x38] sm:$0xff]
    %v94 = vld [vmem:[%s1 + $0x40] sm:$0xff]
    %v95 = vld [vmem:[%s1 + $0x48] sm:$0xff]
    %v96 = vld [vmem:[%s1 + $0x50] sm:$0xff]
    %v97 = vld [vmem:[%s1 + $0x58] sm:$0xff]
    %v102 = vrot.slane %v82, 2
    %v103 = vrot.slane %v82, 4
    %v104 = vrot.slane %v82, 6
    %v105 = vrot.slane %v83, 2
    %v106 = vrot.slane %v83, 4
    %v107 = vrot.slane %v84, 2
    %v108 = vrot.slane %v84, 4
    %v109 = vrot.slane %v84, 6
    %v110 = vrot.slane %v85, 2
    %v111 = vrot.slane %v85, 4
    %112 = vst [vmem:[#allocation1] ss:$4 sm:$0xff] %v82
    %s113 = scalar_lea.vmem [#allocation1], 1
    %114 = vst [vmem:[%s113] ss:$4 sm:$0xff] %v102
    %s115 = scalar_lea.vmem [#allocation1], 2
    %116 = vst [vmem:[%s115] ss:$4 sm:$0xff] %v103
    %s117 = scalar_lea.vmem [#allocation1], 3
    %118 = vst [vmem:[%s117] ss:$4 sm:$0xff] %v104
    %s119 = scalar_lea.vmem [#allocation1], 32
    %120 = vst [vmem:[%s119] ss:$4 sm:$0xff] %v83
    %s121 = scalar_lea.vmem [#allocation1], 33
    %122 = vst [vmem:[%s121] ss:$4 sm:$0xff] %v105
    %s123 = scalar_lea.vmem [#allocation1], 34
    %124 = vst [vmem:[%s123] ss:$4 sm:$0xff] %v106
    %s125 = scalar_lea.vmem [#allocation1], 35
    %126 = vst [vmem:[%s125] ss:$4 sm:$0xff] %v84
    %v127 = vld.sshfl [vmem:[#allocation1] sm:$0xff pattern:$0x73625140]
    %v128 = vld.sshfl [vmem:[#allocation1 + $0x20] sm:$0xff pattern:$0x73625140]
    %129 = vst [vmem:[#allocation1] ss:$4 sm:$0xff] %v107
    %130 = vst [vmem:[%s113] ss:$4 sm:$0xff] %v108
    %131 = vst [vmem:[%s115] ss:$4 sm:$0xff] %v109
    %132 = vst [vmem:[%s117] ss:$4 sm:$0xff] %v85
    %133 = vst [vmem:[%s119] ss:$4 sm:$0xff] %v110
    %134 = vst [vmem:[%s121] ss:$4 sm:$0xff] %v111
    %v135 = vld.sshfl [vmem:[#allocation1] sm:$0xff pattern:$0x73625140]
    %v136 = vld.sshfl [vmem:[#allocation1 + $0x20] sm:$0xff pattern:$0x73625140]
    %vm137 = vcmask 785408
    %v138 = vsel %vm137, %v127, 0
    %v140 = vsel %vm137, %v128, 0
    %v142 = vsel %vm137, %v135, 0
    %v144 = vsel %vm137, %v136, 0
    %146 = vmatpush.msra.mxu0 0.0
    %147 = vmatpush.msra.mxu0 0.0
    %148 = vmatpush.msra.mxu0 0.0
    %149 = vmatpush.msra.mxu0 0.0
    %150 = vmatpush.msra.mxu0 %v97
    %151 = vmatpush.msra.mxu0 %v96
    %152 = vmatpush.msra.mxu0 %v95
    %153 = vmatpush.msra.mxu0 %v94
    %154 = vmatpush.msra.mxu0 %v93
    %155 = vmatpush.msra.mxu0 %v92
    %156 = vmatpush.msra.mxu0 %v91
    %157 = vmatpush.msra.mxu0 %v90
    %158 = vmatpush.msra.mxu0 %v89
    %159 = vmatpush.msra.mxu0 %v88
    %160 = vmatpush.msra.mxu0 %v87
    %161 = vmatpush.msra.mxu0 %v86
    %162 = vmatmul.f32.gmra.mxu0 %v138
    %v163 = vpop.f32.mrf.mxu0
    %v164 = vadd.f32 0.0, %v163
    %165 = vmatmul.f32.gmra.mxu0 %v140
    %v166 = vpop.f32.mrf.mxu0
    %v167 = vadd.f32 0.0, %v166
    %168 = vmatmul.f32.gmra.mxu0 %v142
    %v169 = vpop.f32.mrf.mxu0
    %v170 = vadd.f32 0.0, %v169
    %171 = vmatmul.f32.gmra.mxu0 %v144
    %v172 = vpop.f32.mrf.mxu0
    %v173 = vadd.f32 0.0, %v172
    %174 = vdwg.mxu0
    %v179 = vrot.slane %v164, 2
    %v180 = vrot.slane %v164, 4
    %v181 = vrot.slane %v164, 6
    %v182 = vrot.slane %v167, 2
    %v183 = vrot.slane %v167, 4
    %v184 = vrot.slane %v167, 6
    %v185 = vrot.slane %v170, 2
    %v186 = vrot.slane %v170, 4
    %v187 = vrot.slane %v170, 6
    %v188 = vrot.slane %v173, 2
    %189 = vst [vmem:[#allocation1] ss:$4 sm:$0xff] %v164
    %s190 = scalar_lea.vmem [#allocation1], 1
    %191 = vst [vmem:[%s190] ss:$4 sm:$0xff] %v179
    %s192 = scalar_lea.vmem [#allocation1], 2
    %193 = vst [vmem:[%s192] ss:$4 sm:$0xff] %v180
    %s194 = scalar_lea.vmem [#allocation1], 3
    %195 = vst [vmem:[%s194] ss:$4 sm:$0xff] %v181
    %s196 = scalar_lea.vmem [#allocation1], 32
    %197 = vst [vmem:[%s196] ss:$4 sm:$0xff] %v167
    %s198 = scalar_lea.vmem [#allocation1], 33
    %199 = vst [vmem:[%s198] ss:$4 sm:$0xff] %v182
    %s200 = scalar_lea.vmem [#allocation1], 34
    %201 = vst [vmem:[%s200] ss:$4 sm:$0xff] %v183
    %v202 = vld.sshfl [vmem:[#allocation1] sm:$0xff pattern:$0x73625140]
    %v203 = vld.sshfl [vmem:[#allocation1 + $0x20] sm:$0xff pattern:$0x73625140]
    %204 = vst [vmem:[#allocation1] ss:$4 sm:$0xff] %v184
    %205 = vst [vmem:[%s190] ss:$4 sm:$0xff] %v170
    %206 = vst [vmem:[%s192] ss:$4 sm:$0xff] %v185
    %207 = vst [vmem:[%s194] ss:$4 sm:$0xff] %v186
    %208 = vst [vmem:[%s196] ss:$4 sm:$0xff] %v187
    %209 = vst [vmem:[%s198] ss:$4 sm:$0xff] %v173
    %210 = vst [vmem:[%s200] ss:$4 sm:$0xff] %v188
    %v211 = vld.sshfl [vmem:[#allocation1] sm:$0xff pattern:$0x73625140]
    %v212 = vld.sshfl [vmem:[#allocation1 + $0x20] sm:$0xff pattern:$0x73625140]
    %v217 = vsel %vm76, %v202, -inf
    %vm218 = vcmask 259072
    %v219 = vsel %vm218, %v203, -inf
    %v220 = vmax.f32 %v217, %v219
    %v221 = vrot.slane %v220, 4
    %v222 = vmax.f32 %v220, %v221
    %v223 = vrot.slane %v222, 2
    %v224 = vmax.f32 %v222, %v223
    %v225 = vrot.slane %v224, 1
    %v226 = vmax.f32 %v224, %v225
    %v227 = vsel %vm76, %v211, -inf
    %v228 = vsel %vm218, %v212, -inf
    %v229 = vmax.f32 %v227, %v228
    %v230 = vrot.slane %v229, 4
    %v231 = vmax.f32 %v229, %v230
    %v232 = vrot.slane %v231, 2
    %v233 = vmax.f32 %v231, %v232
    %v234 = vrot.slane %v233, 1
    %v235 = vmax.f32 %v233, %v234
    %vm236 = vcmask 1044480
    %v237 = vrot.slane %v30, 3
    %v238 = vrot.slane %v31, 3
    %v239 = vsel %vm236, %v237, %v238
    %v240 = vrot.slane %v32, 3
    %v241 = vrot.slane %v33, 3
    %v242 = vsel %vm236, %v240, %v241
    %243 = vrot.lane.b32.xlu0 %v239, 96
    %v244 = vpop.permute.xlu0 %243
    %245 = vrot.lane.b32.xlu0 %v238, 96
    %v246 = vpop.permute.xlu0 %245
    %247 = vrot.lane.b32.xlu0 %v242, 96
    %v248 = vpop.permute.xlu0 %247
    %249 = vrot.lane.b32.xlu0 %v241, 96
    %v250 = vpop.permute.xlu0 %249
    %v255 = vsel %vm137, %v82, %v244
    %v256 = vsel %vm137, %v83, %v246
    %v257 = vsel %vm137, %v84, %v248
    %v258 = vsel %vm137, %v85, %v250
    %v259 = vld [vmem:[%s2] sm:$0xff]
    %v260 = vld [vmem:[%s2 + $0x8] sm:$0xff]
    %v261 = vld [vmem:[%s2 + $0x10] sm:$0xff]
    %v262 = vld [vmem:[%s2 + $0x18] sm:$0xff]
    %v263 = vld [vmem:[%s2 + $0x20] sm:$0xff]
    %v264 = vld [vmem:[%s2 + $0x28] sm:$0xff]
    %v265 = vld [vmem:[%s2 + $0x30] sm:$0xff]
    %v266 = vld [vmem:[%s2 + $0x38] sm:$0xff]
    %v267 = vld [vmem:[%s2 + $0x40] sm:$0xff]
    %v268 = vld [vmem:[%s2 + $0x48] sm:$0xff]
    %v269 = vld [vmem:[%s2 + $0x50] sm:$0xff]
    %v270 = vld [vmem:[%s2 + $0x58] sm:$0xff]
    %v271 = vld [vmem:[%s2 + $0x60] sm:$0xff]
    %v272 = vld [vmem:[%s2 + $0x68] sm:$0xff]
    %v273 = vld [vmem:[%s2 + $0x70] sm:$0xff]
    %v274 = vld [vmem:[%s2 + $0x78] sm:$0xff]
    %v279 = vrot.slane %v255, 1
    %v280 = vrot.slane %v255, 2
    %v281 = vrot.slane %v255, 3
    %v282 = vrot.slane %v255, 4
    %v283 = vrot.slane %v255, 5
    %v284 = vrot.slane %v255, 6
    %v285 = vrot.slane %v255, 7
    %v286 = vrot.slane %v256, 1
    %v287 = vrot.slane %v256, 2
    %v288 = vrot.slane %v256, 3
    %v289 = vrot.slane %v256, 4
    %v290 = vrot.slane %v257, 1
    %v291 = vrot.slane %v257, 2
    %v292 = vrot.slane %v257, 3
    %v293 = vrot.slane %v257, 4
    %v294 = vrot.slane %v257, 5
    %v295 = vrot.slane %v257, 6
    %v296 = vrot.slane %v257, 7
    %v297 = vrot.slane %v258, 1
    %v298 = vrot.slane %v258, 2
    %v299 = vrot.slane %v258, 3
    %v300 = vrot.slane %v258, 4
    %301 = vst [vmem:[#allocation1] ss:$9 sm:$0xff] %v255
    %s302 = scalar_lea.vmem [#allocation1], 1
    %303 = vst [vmem:[%s302] ss:$9 sm:$0xff] %v279
    %s304 = scalar_lea.vmem [#allocation1], 2
    %305 = vst [vmem:[%s304] ss:$9 sm:$0xff] %v280
    %s306 = scalar_lea.vmem [#allocation1], 3
    %307 = vst [vmem:[%s306] ss:$9 sm:$0xff] %v281
    %s308 = scalar_lea.vmem [#allocation1], 4
    %309 = vst [vmem:[%s308] ss:$9 sm:$0xff] %v282
    %s310 = scalar_lea.vmem [#allocation1], 5
    %311 = vst [vmem:[%s310] ss:$9 sm:$0xff] %v283
    %s312 = scalar_lea.vmem [#allocation1], 6
    %313 = vst [vmem:[%s312] ss:$9 sm:$0xff] %v284
    %s314 = scalar_lea.vmem [#allocation1], 7
    %315 = vst [vmem:[%s314] ss:$9 sm:$0xff] %v285
    %v316 = vld [vmem:[#allocation1] sm:$0xff]
    %317 = vst [vmem:[#allocation1] ss:$9 sm:$0xff] %v256
    %318 = vst [vmem:[%s302] ss:$9 sm:$0xff] %v286
    %319 = vst [vmem:[%s304] ss:$9 sm:$0xff] %v287
    %320 = vst [vmem:[%s306] ss:$9 sm:$0xff] %v288
    %321 = vst [vmem:[%s308] ss:$9 sm:$0xff] %v289
    %322 = vst [vmem:[%s310] ss:$9 sm:$0xff] %v257
    %323 = vst [vmem:[%s312] ss:$9 sm:$0xff] %v290
    %324 = vst [vmem:[%s314] ss:$9 sm:$0xff] %v291
    %v325 = vld [vmem:[#allocation1] sm:$0xff]
    %326 = vst [vmem:[#allocation1] ss:$9 sm:$0xff] %v292
    %327 = vst [vmem:[%s302] ss:$9 sm:$0xff] %v293
    %328 = vst [vmem:[%s304] ss:$9 sm:$0xff] %v294
    %329 = vst [vmem:[%s306] ss:$9 sm:$0xff] %v295
    %330 = vst [vmem:[%s308] ss:$9 sm:$0xff] %v296
    %331 = vst [vmem:[%s310] ss:$9 sm:$0xff] %v258
    %332 = vst [vmem:[%s312] ss:$9 sm:$0xff] %v297
    %333 = vst [vmem:[%s314] ss:$9 sm:$0xff] %v298
    %v334 = vld [vmem:[#allocation1] sm:$0xff]
    %335 = vst [vmem:[#allocation1] ss:$9 sm:$0xff] %v299
    %336 = vst [vmem:[%s302] ss:$9 sm:$0xff] %v300
    %v337 = vld [vmem:[#allocation1] sm:$0xff]
    %342 = vmatpush.msra.mxu0 %v274
    %343 = vmatpush.msra.mxu0 %v273
    %344 = vmatpush.msra.mxu0 %v272
    %345 = vmatpush.msra.mxu0 %v271
    %346 = vmatpush.msra.mxu0 %v270
    %347 = vmatpush.msra.mxu0 %v269
    %348 = vmatpush.msra.mxu0 %v268
    %349 = vmatpush.msra.mxu0 %v267
    %350 = vmatpush.msra.mxu0 %v266
    %351 = vmatpush.msra.mxu0 %v265
    %352 = vmatpush.msra.mxu0 %v264
    %353 = vmatpush.msra.mxu0 %v263
    %354 = vmatpush.msra.mxu0 %v262
    %355 = vmatpush.msra.mxu0 %v261
    %356 = vmatpush.msra.mxu0 %v260
    %357 = vmatpush.msra.mxu0 %v259
    %358 = vmatmul.f32.gmra.mxu0 %v316
    %v359 = vpop.f32.mrf.mxu0
    %v360 = vadd.f32 0.0, %v359
    %361 = vmatmul.f32.gmra.mxu0 %v325
    %v362 = vpop.f32.mrf.mxu0
    %v363 = vadd.f32 0.0, %v362
    %364 = vmatmul.f32.gmra.mxu0 %v334
    %v365 = vpop.f32.mrf.mxu0
    %v366 = vadd.f32 0.0, %v365
    %367 = vmatmul.f32.gmra.mxu0 %v337
    %v368 = vpop.f32.mrf.mxu0
    %v369 = vadd.f32 0.0, %v368
    %370 = vdwg.mxu0
    %v375 = vrot.slane %v360, 1
    %v376 = vrot.slane %v360, 2
    %v377 = vrot.slane %v360, 3
    %v378 = vrot.slane %v360, 4
    %v379 = vrot.slane %v360, 5
    %v380 = vrot.slane %v360, 6
    %v381 = vrot.slane %v360, 7
    %v382 = vrot.slane %v363, 1
    %v383 = vrot.slane %v363, 2
    %v384 = vrot.slane %v363, 3
    %v385 = vrot.slane %v363, 4
    %v386 = vrot.slane %v363, 5
    %v387 = vrot.slane %v363, 6
    %v388 = vrot.slane %v363, 7
    %v389 = vrot.slane %v366, 1
    %v390 = vrot.slane %v366, 2
    %v391 = vrot.slane %v366, 3
    %v392 = vrot.slane %v366, 4
    %v393 = vrot.slane %v366, 5
    %v394 = vrot.slane %v366, 6
    %v395 = vrot.slane %v366, 7
    %v396 = vrot.slane %v369, 1
    %397 = vst [vmem:[#allocation1] ss:$9 sm:$0xff] %v360
    %s398 = scalar_lea.vmem [#allocation1], 1
    %399 = vst [vmem:[%s398] ss:$9 sm:$0xff] %v375
    %s400 = scalar_lea.vmem [#allocation1], 2
    %401 = vst [vmem:[%s400] ss:$9 sm:$0xff] %v376
    %s402 = scalar_lea.vmem [#allocation1], 3
    %403 = vst [vmem:[%s402] ss:$9 sm:$0xff] %v377
    %s404 = scalar_lea.vmem [#allocation1], 4
    %405 = vst [vmem:[%s404] ss:$9 sm:$0xff] %v378
    %s406 = scalar_lea.vmem [#allocation1], 5
    %407 = vst [vmem:[%s406] ss:$9 sm:$0xff] %v379
    %s408 = scalar_lea.vmem [#allocation1], 6
    %409 = vst [vmem:[%s408] ss:$9 sm:$0xff] %v380
    %s410 = scalar_lea.vmem [#allocation1], 7
    %411 = vst [vmem:[%s410] ss:$9 sm:$0xff] %v381
    %v412 = vld [vmem:[#allocation1] sm:$0xff]
    %413 = vst [vmem:[#allocation1] ss:$9 sm:$0xff] %v363
    %414 = vst [vmem:[%s398] ss:$9 sm:$0xff] %v382
    %415 = vst [vmem:[%s400] ss:$9 sm:$0xff] %v383
    %416 = vst [vmem:[%s402] ss:$9 sm:$0xff] %v384
    %417 = vst [vmem:[%s404] ss:$9 sm:$0xff] %v385
    %v418 = vld [vmem:[#allocation1] sm:$0xff]
    %419 = vst [vmem:[#allocation1] ss:$9 sm:$0xff] %v386
    %420 = vst [vmem:[%s398] ss:$9 sm:$0xff] %v387
    %421 = vst [vmem:[%s400] ss:$9 sm:$0xff] %v388
    %422 = vst [vmem:[%s402] ss:$9 sm:$0xff] %v366
    %423 = vst [vmem:[%s404] ss:$9 sm:$0xff] %v389
    %424 = vst [vmem:[%s406] ss:$9 sm:$0xff] %v390
    %425 = vst [vmem:[%s408] ss:$9 sm:$0xff] %v391
    %426 = vst [vmem:[%s410] ss:$9 sm:$0xff] %v392
    %v427 = vld [vmem:[#allocation1] sm:$0xff]
    %428 = vst [vmem:[#allocation1] ss:$9 sm:$0xff] %v393
    %429 = vst [vmem:[%s398] ss:$9 sm:$0xff] %v394
    %430 = vst [vmem:[%s400] ss:$9 sm:$0xff] %v395
    %431 = vst [vmem:[%s402] ss:$9 sm:$0xff] %v369
    %432 = vst [vmem:[%s404] ss:$9 sm:$0xff] %v396
    %v433 = vld [vmem:[#allocation1] sm:$0xff]
    %v438 = vsel %vm76, %v412, -inf
    %vm439 = vcmask 258048
    %v440 = vsel %vm439, %v418, -inf
    %v441 = vmax.f32 %v438, %v440
    %v442 = vrot.slane %v441, 4
    %v443 = vmax.f32 %v441, %v442
    %v444 = vrot.slane %v443, 2
    %v445 = vmax.f32 %v443, %v444
    %v446 = vrot.slane %v445, 1
    %v447 = vmax.f32 %v445, %v446
    %v448 = vsel %vm76, %v427, -inf
    %v449 = vsel %vm439, %v433, -inf
    %v450 = vmax.f32 %v448, %v449
    %v451 = vrot.slane %v450, 4
    %v452 = vmax.f32 %v450, %v451
    %v453 = vrot.slane %v452, 2
    %v454 = vmax.f32 %v452, %v453
    %v455 = vrot.slane %v454, 1
    %v456 = vmax.f32 %v454, %v455
    %vm457 = vcmask 1043456
    %v458 = vrot.slane %v30, 4
    %v459 = vrot.slane %v31, 4
    %v460 = vsel %vm457, %v458, %v459
    %v461 = vrot.slane %v32, 4
    %v462 = vrot.slane %v33, 4
    %v463 = vsel %vm457, %v461, %v462
    %v464 = vld [vmem:[%s3] sm:$0xff]
    %v465 = vld [vmem:[%s3 + $0x8] sm:$0xff]
    %v466 = vld [vmem:[%s3 + $0x10] sm:$0xff]
    %v467 = vld [vmem:[%s3 + $0x18] sm:$0xff]
    %v468 = vld [vmem:[%s3 + $0x20] sm:$0xff]
    %v469 = vld [vmem:[%s3 + $0x28] sm:$0xff]
    %v470 = vld [vmem:[%s3 + $0x30] sm:$0xff]
    %v471 = vld [vmem:[%s3 + $0x38] sm:$0xff]
    %v472 = vld [vmem:[%s3 + $0x40] sm:$0xff]
    %v473 = vld [vmem:[%s3 + $0x48] sm:$0xff]
    %v474 = vld [vmem:[%s3 + $0x50] sm:$0xff]
    %v475 = vld [vmem:[%s3 + $0x58] sm:$0xff]
    %v476 = vld [vmem:[%s3 + $0x60] sm:$0xff]
    %v477 = vld [vmem:[%s3 + $0x68] sm:$0xff]
    %v478 = vld [vmem:[%s3 + $0x70] sm:$0xff]
    %v479 = vld [vmem:[%s3 + $0x78] sm:$0xff]
    %v480 = vld [vmem:[%s3 + $0x80] sm:$0xff]
    %v481 = vld [vmem:[%s3 + $0x88] sm:$0xff]
    %v482 = vld [vmem:[%s3 + $0x90] sm:$0xff]
    %v483 = vld [vmem:[%s3 + $0x98] sm:$0xff]
    %v484 = vrot.slane %v460, 4
    %v485 = vrot.slane %v459, 4
    %v486 = vrot.slane %v463, 4
    %v487 = vrot.slane %v462, 4
    %v488 = vsel %vm457, %v255, %v484
    %v489 = vsel %vm457, %v484, %v255
    %v490 = vrot.slane %v489, 4
    %v491 = vsel %vm457, %v256, %v485
    %v492 = vsel %vm457, %v257, %v486
    %v493 = vsel %vm457, %v486, %v257
    %v494 = vrot.slane %v493, 4
    %v495 = vsel %vm457, %v258, %v487
    %496 = vst [vmem:[#allocation1] ss:$2 sm:$0xff] %v488
    %s497 = scalar_lea.vmem [#allocation1], 1
    %498 = vst [vmem:[%s497] ss:$2 sm:$0xff] %v490
    %s499 = scalar_lea.vmem [#allocation1], 16
    %500 = vst [vmem:[%s499] ss:$2 sm:$0xff] %v491
    %s501 = scalar_lea.vmem [#allocation1], 17
    %502 = vst [vmem:[%s501] ss:$2 sm:$0xff] %v492
    %s503 = scalar_lea.vmem [#allocation1], 32
    %504 = vst [vmem:[%s503] ss:$2 sm:$0xff] %v494
    %s505 = scalar_lea.vmem [#allocation1], 33
    %506 = vst [vmem:[%s505] ss:$2 sm:$0xff] %v495
    %v507 = vld.sshfl [vmem:[#allocation1] sm:$0xff pattern:$0x75316420]
    %v508 = vld.sshfl [vmem:[#allocation1 + $0x8] sm:$0xff pattern:$0x75316420]
    %v509 = vld.sshfl [vmem:[#allocation1 + $0x10] sm:$0xff pattern:$0x75316420]
    %v510 = vld.sshfl [vmem:[#allocation1 + $0x18] sm:$0xff pattern:$0x75316420]
    %v511 = vld.sshfl [vmem:[#allocation1 + $0x20] sm:$0xff pattern:$0x75316420]
    %v512 = vld.sshfl [vmem:[#allocation1 + $0x28] sm:$0xff pattern:$0x75316420]
    %v516 = vsel %vm76, %v508, 0
    %v518 = vsel %vm76, %v510, 0
    %v520 = vsel %vm76, %v512, 0
    %522 = vmatpush.msra.mxu0 %v479
    %523 = vmatpush.msra.mxu0 %v478
    %524 = vmatpush.msra.mxu0 %v477
    %525 = vmatpush.msra.mxu0 %v476
    %526 = vmatpush.msra.mxu0 %v475
    %527 = vmatpush.msra.mxu0 %v474
    %528 = vmatpush.msra.mxu0 %v473
    %529 = vmatpush.msra.mxu0 %v472
    %530 = vmatpush.msra.mxu0 %v471
    %531 = vmatpush.msra.mxu0 %v470
    %532 = vmatpush.msra.mxu0 %v469
    %533 = vmatpush.msra.mxu0 %v468
    %534 = vmatpush.msra.mxu0 %v467
    %535 = vmatpush.msra.mxu0 %v466
    %536 = vmatpush.msra.mxu0 %v465
    %537 = vmatpush.msra.mxu0 %v464
    %538 = vmatmul.f32.gmra.mxu0 %v507
    %v539 = vpop.f32.mrf.mxu0
    %v540 = vadd.f32 0.0, %v539
    %541 = vmatmul.f32.gmra.mxu0 %v509
    %v542 = vpop.f32.mrf.mxu0
    %v543 = vadd.f32 0.0, %v542
    %544 = vmatmul.f32.gmra.mxu0 %v511
    %v545 = vpop.f32.mrf.mxu0
    %v546 = vadd.f32 0.0, %v545
    %547 = vdwg.mxu0
    %548 = vmatpush.msra.mxu0 0.0
    %549 = vmatpush.msra.mxu0 0.0
    %550 = vmatpush.msra.mxu0 0.0
    %551 = vmatpush.msra.mxu0 0.0
    %552 = vmatpush.msra.mxu0 0.0
    %553 = vmatpush.msra.mxu0 0.0
    %554 = vmatpush.msra.mxu0 0.0
    %555 = vmatpush.msra.mxu0 0.0
    %556 = vmatpush.msra.mxu0 0.0
    %557 = vmatpush.msra.mxu0 0.0
    %558 = vmatpush.msra.mxu0 0.0
    %559 = vmatpush.msra.mxu0 0.0
    %560 = vmatpush.msra.mxu0 %v483
    %561 = vmatpush.msra.mxu0 %v482
    %562 = vmatpush.msra.mxu0 %v481
    %563 = vmatpush.msra.mxu0 %v480
    %564 = vmatmul.f32.gmra.mxu0 %v516
    %v565 = vpop.f32.mrf.mxu0
    %v566 = vadd.f32 %v540, %v565
    %567 = vmatmul.f32.gmra.mxu0 %v518
    %v568 = vpop.f32.mrf.mxu0
    %v569 = vadd.f32 %v543, %v568
    %570 = vmatmul.f32.gmra.mxu0 %v520
    %v571 = vpop.f32.mrf.mxu0
    %v572 = vadd.f32 %v546, %v571
    %573 = vdwg.mxu0
    %v577 = vrot.slane %v566, 4
    %v578 = vrot.slane %v569, 4
    %v579 = vrot.slane %v572, 4
    %580 = vst [vmem:[#allocation1] ss:$2 sm:$0xff] %v566
    %s581 = scalar_lea.vmem [#allocation1], 1
    %582 = vst [vmem:[%s581] ss:$2 sm:$0xff] %v577
    %s583 = scalar_lea.vmem [#allocation1], 16
    %584 = vst [vmem:[%s583] ss:$2 sm:$0xff] %v569
    %v585 = vld.sshfl [vmem:[#allocation1] sm:$0xff pattern:$0x75316420]
    %v586 = vld.sshfl [vmem:[#allocation1 + $0x10] sm:$0xff pattern:$0x75316420]
    %s587 = scalar_lea.vmem [#allocation1], 32
    %588 = vst [vmem:[%s587] ss:$2 sm:$0xff] %v578
    %s589 = scalar_lea.vmem [#allocation1], 33
    %590 = vst [vmem:[%s589] ss:$2 sm:$0xff] %v572
    %s591 = scalar_lea.vmem [#allocation1], 48
    %592 = vst [vmem:[%s591] ss:$2 sm:$0xff] %v579
    %v593 = vld.sshfl [vmem:[#allocation1 + $0x20] sm:$0xff pattern:$0x75316420]
    %v594 = vld.sshfl [vmem:[#allocation1 + $0x30] sm:$0xff pattern:$0x75316420]
    %v599 = vsel %vm76, %v585, -inf
    %vm600 = vcmask 257024
    %v601 = vsel %vm600, %v586, -inf
    %v602 = vmax.f32 %v599, %v601
    %v603 = vrot.slane %v602, 4
    %v604 = vmax.f32 %v602, %v603
    %v605 = vrot.slane %v604, 2
    %v606 = vmax.f32 %v604, %v605
    %v607 = vrot.slane %v606, 1
    %v608 = vmax.f32 %v606, %v607
    %v609 = vsel %vm76, %v593, -inf
    %v610 = vsel %vm600, %v594, -inf
    %v611 = vmax.f32 %v609, %v610
    %v612 = vrot.slane %v611, 4
    %v613 = vmax.f32 %v611, %v612
    %v614 = vrot.slane %v613, 2
    %v615 = vmax.f32 %v613, %v614
    %v616 = vrot.slane %v615, 1
    %v617 = vmax.f32 %v615, %v616
    %vm620 = vcmask 1041409
    %v621 = vsel %vm620, %v235, %v226
    %v625 = vsel %vm620, %v456, %v447
    %626 = vrot.lane.b32.xlu0 %v625, 32
    %v627 = vpop.permute.xlu0 %626
    %v631 = vsel %vm620, %v617, %v608
    %632 = vrot.lane.b32.xlu0 %v631, 64
    %v633 = vpop.permute.xlu0 %632
    %v635 = vsel %vm76, %v621, %v627
    %v636 = vsel %vm81, %v635, %v633
    %v637 = vld [vmem:[%s4] sm:$0x1]
    %v639 = vperm.slane %v637, 0
    %v641 = vadd.f32 %v636, %v639
    %v642 = vmax.f32 %v641, 0.0
    %vm643 = vcmask 779264
    %644 = vst.msk [vmem:[#allocation4] sm:$0x3] %vm643, %v642
    %v645 = vld [vmem:[%s5] sm:$0xff]
    %v646 = vld [vmem:[%s5 + $0x8] sm:$0xff]
    %v647 = vld [vmem:[%s5 + $0x10] sm:$0xff]
    %v648 = vld [vmem:[%s5 + $0x18] sm:$0xff]
    %v649 = vld [vmem:[%s5 + $0x20] sm:$0xff]
    %v650 = vld [vmem:[%s5 + $0x28] sm:$0xff]
    %v651 = vld [vmem:[%s5 + $0x30] sm:$0xff]
    %v652 = vld [vmem:[%s5 + $0x38] sm:$0xff]
    %v653 = vld [vmem:[%s5 + $0x40] sm:$0xff]
    %v654 = vld [vmem:[%s5 + $0x48] sm:$0xff]
    %v655 = vld [vmem:[%s5 + $0x50] sm:$0xff]
    %v656 = vld [vmem:[%s5 + $0x58] sm:$0xff]
    %v657 = vld [vmem:[%s6] sm:$0x1]
    %v659 = vperm.slane %v657, 0
    %v662 = vsel %vm137, %v642, 0
    %664 = vmatpush.msra.mxu0 0.0
    %665 = vmatpush.msra.mxu0 0.0
    %666 = vmatpush.msra.mxu0 0.0
    %667 = vmatpush.msra.mxu0 0.0
    %668 = vmatpush.msra.mxu0 %v656
    %669 = vmatpush.msra.mxu0 %v655
    %670 = vmatpush.msra.mxu0 %v654
    %671 = vmatpush.msra.mxu0 %v653
    %672 = vmatpush.msra.mxu0 %v652
    %673 = vmatpush.msra.mxu0 %v651
    %674 = vmatpush.msra.mxu0 %v650
    %675 = vmatpush.msra.mxu0 %v649
    %676 = vmatpush.msra.mxu0 %v648
    %677 = vmatpush.msra.mxu0 %v647
    %678 = vmatpush.msra.mxu0 %v646
    %679 = vmatpush.msra.mxu0 %v645
    %680 = vmatmul.f32.gmra.mxu0 %v662
    %v681 = vpop.f32.mrf.mxu0
    %v682 = vadd.f32 %v659, %v681
    %683 = vdwg.mxu0
    %vm684 = vcmask 9216
    %685 = vst.msk [vmem:[#allocation2] sm:$0x3] %vm684, %v682
    // Predicated region
    $region30: #{tpu_custom_call.1} parent=1 // pred_check
      _
    $region31: #{tpu_custom_call.1} parent=1 // pred_check_branch
      %687 = sbr.rel (0) target = $region33
    $region32: #{tpu_custom_call.1} parent=1 // pred_region
      %689 = vsyncadd [#allocation3], 0
      %s691 = sshll.u32 [#allocation2], 4
      %s692 = int_to_ptr.vmem [resolvable:$true] %s691
      %s693 = sshll.u32 %s7, 4
      %s694 = int_to_ptr.hbm [resolvable:$true] %s693
      %696 = dma.vmem_to_hbm [thread:$0]  %s692, 32, %s694, [#allocation3]
    $region33: #{tpu_custom_call.1} parent=1 // pred_fallthru
      _
    // Predicated region
    $region34: #{tpu_custom_call.1} parent=1 // pred_check
      _
    $region35: #{tpu_custom_call.1} parent=1 // pred_check_branch
      %698 = sbr.rel (0) target = $region37
    $region36: #{tpu_custom_call.1} parent=1 // pred_region
      %700 = vsyncadd [#allocation5], 0
      %s702 = sshll.u32 [#allocation4], 4
      %s703 = int_to_ptr.vmem [resolvable:$true] %s702
      %s704 = sshll.u32 %s8, 4
      %s705 = int_to_ptr.hbm [resolvable:$true] %s704
      %707 = dma.vmem_to_hbm [thread:$0]  %s703, 32, %s705, [#allocation5]
    $region37: #{tpu_custom_call.1} parent=1 // pred_fallthru
      _
    // Predicated region
    $region38: #{tpu_custom_call.1} parent=1 // pred_check
      _
    $region39: #{tpu_custom_call.1} parent=1 // pred_check_branch
      %709 = sbr.rel (0) target = $region41
    $region40: #{tpu_custom_call.1} parent=1 // pred_region
      %711 = dma.done [#allocation3], 32
    $region41: #{tpu_custom_call.1} parent=1 // pred_fallthru
      _
    // Predicated region
    $region42: #{tpu_custom_call.1} parent=1 // pred_check
      _
    $region43: #{tpu_custom_call.1} parent=1 // pred_check_branch
      %713 = sbr.rel (0) target = $region45
    $region44: #{tpu_custom_call.1} parent=1 // pred_region
      %715 = dma.done [#allocation5], 32
    $region45: #{tpu_custom_call.1} parent=1 // pred_fallthru
      _
    %716 = vsyncpa [#allocation3], 1
    %717 = vsyncpa [#allocation5], 1

</llo_original>
